<compile_context>
chip_gen: v7x
topology: tpu7x:2x2x1
jax: 0.10.0
libtpu: 0.0.40
codegen_flags: <defaults>
</compile_context>

<pallas_src>
import math
import numpy as np
import jax
import jax.numpy as jnp
from jax.experimental import pallas as pl

N = 8          # number of graph nodes
IN_CH = 16     # in_channels
OUT_CH = 32    # out_channels
DEG = 6        # fixed neighbor degree per node
TPERC = 0.3
REMOVE = math.floor(N * TPERC)   # torch: math.floor(h.shape[0] * tperc) == 2
KEEP = DEG - 2 * REMOVE
assert KEEP > 0, "trimmed window must be non-empty for this test"


def trimmed_conv_kernel(nbrs_ref, x_ref, w_ref, out_ref):
    # h = x @ W  (use_bias=False)                              -> [N, OUT_CH]
    h = jnp.dot(x_ref[...], w_ref[...], preferred_element_type=jnp.float32)

    nbrs = nbrs_ref[...]                                       # [N, DEG] int32
    node_iota = jax.lax.broadcasted_iota(jnp.int32, (N, N), 1)  # node ids on lanes

    # Gather: for neighbor slot d, msgs[d][n, :] = h[nbrs[n, d], :], done as a
    # one-hot [N, N] selection matmul on the (otherwise idle) MXU.  Everything
    # stays in vregs — no scratch buffer, no masked per-row stores.
    msgs = []
    for d in range(DEG):
        sel = (nbrs[:, d:d + 1] == node_iota).astype(jnp.float32)   # [N, N]
        msgs.append(jnp.dot(sel, h, preferred_element_type=jnp.float32))

    # Stable rank of each neighbor slot among the DEG values of its
    # (node, channel):  rank_d = #{e: v_e < v_d} + #{e < d: v_e == v_d}.
    # 15 pairwise compares, fully vectorized over all nodes and channels.
    ranks = [jnp.zeros((N, OUT_CH), jnp.float32) for _ in range(DEG)]
    for d in range(DEG):
        for e in range(d):
            le = (msgs[e] <= msgs[d]).astype(jnp.float32)  # tie -> earlier slot
            ranks[d] = ranks[d] + le
            ranks[e] = ranks[e] + (1.0 - le)

    # Keep the middle ranks [REMOVE, DEG - REMOVE) (== sort, drop REMOVE
    # smallest and largest with multiplicity) and average them.
    lo = float(REMOVE)
    hi = float(DEG - REMOVE)
    acc = jnp.zeros((N, OUT_CH), jnp.float32)
    for d in range(DEG):
        keep = (ranks[d] >= lo) & (ranks[d] < hi)
        acc = acc + jnp.where(keep, msgs[d], 0.0)

    # activation = get_activation(None) == identity
    out_ref[...] = acc * (1.0 / KEEP)


def trimmed_convolution(x, w, nbrs):
    # Whole problem fits in a few vregs: single invocation, full arrays in
    # VMEM, no grid / no scalar prefetch.
    return pl.pallas_call(
        trimmed_conv_kernel,
        out_shape=jax.ShapeDtypeStruct((N, OUT_CH), jnp.float32),
    )(nbrs, x, w)


if __name__ == "__main__":
    key = jax.random.PRNGKey(0)
    kx, kw, kn = jax.random.split(key, 3)

    x = jax.random.normal(kx, (N, IN_CH), dtype=jnp.float32)
    # nn.Linear default init: U(-1/sqrt(in), 1/sqrt(in))
    bound = 1.0 / math.sqrt(IN_CH)
    w = jax.random.uniform(kw, (IN_CH, OUT_CH), minval=-bound, maxval=bound,
                           dtype=jnp.float32)
    # TODO(synk): torch module takes a ragged python list of neighbor tensors;
    # modeled here as a fixed-degree dense [N, DEG] index table.
    nbrs = jax.random.randint(kn, (N, DEG), 0, N, dtype=jnp.int32)

    out = jax.block_until_ready(trimmed_convolution(x, w, nbrs))

    # Reference mirroring the PyTorch forward (use_bias=False, activation=None).
    h = np.asarray(x) @ np.asarray(w)
    nbrs_np = np.asarray(nbrs)
    rows = []
    for n in range(N):
        msg = np.sort(h[nbrs_np[n]], axis=0)
        if REMOVE > 0:
            msg = msg[REMOVE:-REMOVE]
        rows.append(msg.mean(axis=0))
    ref = np.stack(rows)

    np.testing.assert_allclose(np.asarray(out), ref, rtol=1e-5, atol=1e-5)
    print("KERNEL_OK")
</pallas_src>

<mosaic_0001>
module attributes {stable_mosaic.version = 11 : i64} {
  func.func @trimmed_conv_kernel(%arg0: memref<8x6xi32, #tpu.memory_space<vmem>>, %arg1: memref<8x16xf32, #tpu.memory_space<vmem>>, %arg2: memref<16x32xf32, #tpu.memory_space<vmem>>, %arg3: memref<8x32xf32, #tpu.memory_space<vmem>>) attributes {dimension_semantics = [], scalar_prefetch = 0 : i64, scratch_operands = 0 : i64, tpu.core_type = #tpu.core_type<tc>} {
    %c0 = arith.constant 0 : index
    %c0_0 = arith.constant 0 : index
    %0 = vector.load %arg1[%c0, %c0_0] : memref<8x16xf32, #tpu.memory_space<vmem>>, vector<8x16xf32>
    %c0_1 = arith.constant 0 : index
    %c0_2 = arith.constant 0 : index
    %1 = vector.load %arg2[%c0_1, %c0_2] : memref<16x32xf32, #tpu.memory_space<vmem>>, vector<16x32xf32>
    %cst = arith.constant dense<0.000000e+00> : vector<8x32xf32>
    %2 = tpu.matmul %0, %1, %cst {dimension_numbers = #tpu.dot_dimension_numbers<[1], [0], [0], [1], [0, 0, 1, 1], [], []>} : vector<8x16xf32>, vector<16x32xf32>, vector<8x32xf32> -> vector<8x32xf32>
    %c0_3 = arith.constant 0 : index
    %c0_4 = arith.constant 0 : index
    %3 = vector.load %arg0[%c0_3, %c0_4] : memref<8x6xi32, #tpu.memory_space<vmem>>, vector<8x6xi32>
    %4 = tpu.iota {dimensions = array<i32: 1>} : vector<8x8xi32>
    %5 = vector.extract_strided_slice %3 {offsets = [0, 0], sizes = [8, 1], strides = [1, 1]} : vector<8x6xi32> to vector<8x1xi32>
    %6 = vector.broadcast %5 : vector<8x1xi32> to vector<8x8xi32>
    %7 = arith.cmpi eq, %6, %4 : vector<8x8xi32>
    %8 = arith.extui %7 : vector<8x8xi1> to vector<8x8xi32>
    %9 = arith.sitofp %8 : vector<8x8xi32> to vector<8x8xf32>
    %cst_5 = arith.constant dense<0.000000e+00> : vector<8x32xf32>
    %10 = tpu.matmul %9, %2, %cst_5 {dimension_numbers = #tpu.dot_dimension_numbers<[1], [0], [0], [1], [0, 0, 1, 1], [], []>} : vector<8x8xf32>, vector<8x32xf32>, vector<8x32xf32> -> vector<8x32xf32>
    %11 = vector.extract_strided_slice %3 {offsets = [0, 1], sizes = [8, 1], strides = [1, 1]} : vector<8x6xi32> to vector<8x1xi32>
    %12 = vector.broadcast %11 : vector<8x1xi32> to vector<8x8xi32>
    %13 = arith.cmpi eq, %12, %4 : vector<8x8xi32>
    %14 = arith.extui %13 : vector<8x8xi1> to vector<8x8xi32>
    %15 = arith.sitofp %14 : vector<8x8xi32> to vector<8x8xf32>
    %cst_6 = arith.constant dense<0.000000e+00> : vector<8x32xf32>
    %16 = tpu.matmul %15, %2, %cst_6 {dimension_numbers = #tpu.dot_dimension_numbers<[1], [0], [0], [1], [0, 0, 1, 1], [], []>} : vector<8x8xf32>, vector<8x32xf32>, vector<8x32xf32> -> vector<8x32xf32>
    %17 = vector.extract_strided_slice %3 {offsets = [0, 2], sizes = [8, 1], strides = [1, 1]} : vector<8x6xi32> to vector<8x1xi32>
    %18 = vector.broadcast %17 : vector<8x1xi32> to vector<8x8xi32>
    %19 = arith.cmpi eq, %18, %4 : vector<8x8xi32>
    %20 = arith.extui %19 : vector<8x8xi1> to vector<8x8xi32>
    %21 = arith.sitofp %20 : vector<8x8xi32> to vector<8x8xf32>
    %cst_7 = arith.constant dense<0.000000e+00> : vector<8x32xf32>
    %22 = tpu.matmul %21, %2, %cst_7 {dimension_numbers = #tpu.dot_dimension_numbers<[1], [0], [0], [1], [0, 0, 1, 1], [], []>} : vector<8x8xf32>, vector<8x32xf32>, vector<8x32xf32> -> vector<8x32xf32>
    %23 = vector.extract_strided_slice %3 {offsets = [0, 3], sizes = [8, 1], strides = [1, 1]} : vector<8x6xi32> to vector<8x1xi32>
    %24 = vector.broadcast %23 : vector<8x1xi32> to vector<8x8xi32>
    %25 = arith.cmpi eq, %24, %4 : vector<8x8xi32>
    %26 = arith.extui %25 : vector<8x8xi1> to vector<8x8xi32>
    %27 = arith.sitofp %26 : vector<8x8xi32> to vector<8x8xf32>
    %cst_8 = arith.constant dense<0.000000e+00> : vector<8x32xf32>
    %28 = tpu.matmul %27, %2, %cst_8 {dimension_numbers = #tpu.dot_dimension_numbers<[1], [0], [0], [1], [0, 0, 1, 1], [], []>} : vector<8x8xf32>, vector<8x32xf32>, vector<8x32xf32> -> vector<8x32xf32>
    %29 = vector.extract_strided_slice %3 {offsets = [0, 4], sizes = [8, 1], strides = [1, 1]} : vector<8x6xi32> to vector<8x1xi32>
    %30 = vector.broadcast %29 : vector<8x1xi32> to vector<8x8xi32>
    %31 = arith.cmpi eq, %30, %4 : vector<8x8xi32>
    %32 = arith.extui %31 : vector<8x8xi1> to vector<8x8xi32>
    %33 = arith.sitofp %32 : vector<8x8xi32> to vector<8x8xf32>
    %cst_9 = arith.constant dense<0.000000e+00> : vector<8x32xf32>
    %34 = tpu.matmul %33, %2, %cst_9 {dimension_numbers = #tpu.dot_dimension_numbers<[1], [0], [0], [1], [0, 0, 1, 1], [], []>} : vector<8x8xf32>, vector<8x32xf32>, vector<8x32xf32> -> vector<8x32xf32>
    %35 = vector.extract_strided_slice %3 {offsets = [0, 5], sizes = [8, 1], strides = [1, 1]} : vector<8x6xi32> to vector<8x1xi32>
    %36 = vector.broadcast %35 : vector<8x1xi32> to vector<8x8xi32>
    %37 = arith.cmpi eq, %36, %4 : vector<8x8xi32>
    %38 = arith.extui %37 : vector<8x8xi1> to vector<8x8xi32>
    %39 = arith.sitofp %38 : vector<8x8xi32> to vector<8x8xf32>
    %cst_10 = arith.constant dense<0.000000e+00> : vector<8x32xf32>
    %40 = tpu.matmul %39, %2, %cst_10 {dimension_numbers = #tpu.dot_dimension_numbers<[1], [0], [0], [1], [0, 0, 1, 1], [], []>} : vector<8x8xf32>, vector<8x32xf32>, vector<8x32xf32> -> vector<8x32xf32>
    %cst_11 = arith.constant 0.000000e+00 : f32
    %41 = vector.broadcast %cst_11 : f32 to vector<8x32xf32>
    %cst_12 = arith.constant 0.000000e+00 : f32
    %42 = vector.broadcast %cst_12 : f32 to vector<8x32xf32>
    %cst_13 = arith.constant 0.000000e+00 : f32
    %43 = vector.broadcast %cst_13 : f32 to vector<8x32xf32>
    %cst_14 = arith.constant 0.000000e+00 : f32
    %44 = vector.broadcast %cst_14 : f32 to vector<8x32xf32>
    %cst_15 = arith.constant 0.000000e+00 : f32
    %45 = vector.broadcast %cst_15 : f32 to vector<8x32xf32>
    %cst_16 = arith.constant 0.000000e+00 : f32
    %46 = vector.broadcast %cst_16 : f32 to vector<8x32xf32>
    %47 = arith.cmpf ole, %10, %16 : vector<8x32xf32>
    %48 = arith.extui %47 : vector<8x32xi1> to vector<8x32xi32>
    %49 = arith.sitofp %48 : vector<8x32xi32> to vector<8x32xf32>
    %50 = arith.addf %42, %49 : vector<8x32xf32>
    %cst_17 = arith.constant 1.000000e+00 : f32
    %51 = vector.broadcast %cst_17 : f32 to vector<8x32xf32>
    %52 = arith.subf %51, %49 : vector<8x32xf32>
    %53 = arith.addf %41, %52 : vector<8x32xf32>
    %54 = arith.cmpf ole, %10, %22 : vector<8x32xf32>
    %55 = arith.extui %54 : vector<8x32xi1> to vector<8x32xi32>
    %56 = arith.sitofp %55 : vector<8x32xi32> to vector<8x32xf32>
    %57 = arith.addf %43, %56 : vector<8x32xf32>
    %cst_18 = arith.constant 1.000000e+00 : f32
    %58 = vector.broadcast %cst_18 : f32 to vector<8x32xf32>
    %59 = arith.subf %58, %56 : vector<8x32xf32>
    %60 = arith.addf %53, %59 : vector<8x32xf32>
    %61 = arith.cmpf ole, %16, %22 : vector<8x32xf32>
    %62 = arith.extui %61 : vector<8x32xi1> to vector<8x32xi32>
    %63 = arith.sitofp %62 : vector<8x32xi32> to vector<8x32xf32>
    %64 = arith.addf %57, %63 : vector<8x32xf32>
    %cst_19 = arith.constant 1.000000e+00 : f32
    %65 = vector.broadcast %cst_19 : f32 to vector<8x32xf32>
    %66 = arith.subf %65, %63 : vector<8x32xf32>
    %67 = arith.addf %50, %66 : vector<8x32xf32>
    %68 = arith.cmpf ole, %10, %28 : vector<8x32xf32>
    %69 = arith.extui %68 : vector<8x32xi1> to vector<8x32xi32>
    %70 = arith.sitofp %69 : vector<8x32xi32> to vector<8x32xf32>
    %71 = arith.addf %44, %70 : vector<8x32xf32>
    %cst_20 = arith.constant 1.000000e+00 : f32
    %72 = vector.broadcast %cst_20 : f32 to vector<8x32xf32>
    %73 = arith.subf %72, %70 : vector<8x32xf32>
    %74 = arith.addf %60, %73 : vector<8x32xf32>
    %75 = arith.cmpf ole, %16, %28 : vector<8x32xf32>
    %76 = arith.extui %75 : vector<8x32xi1> to vector<8x32xi32>
    %77 = arith.sitofp %76 : vector<8x32xi32> to vector<8x32xf32>
    %78 = arith.addf %71, %77 : vector<8x32xf32>
    %cst_21 = arith.constant 1.000000e+00 : f32
    %79 = vector.broadcast %cst_21 : f32 to vector<8x32xf32>
    %80 = arith.subf %79, %77 : vector<8x32xf32>
    %81 = arith.addf %67, %80 : vector<8x32xf32>
    %82 = arith.cmpf ole, %22, %28 : vector<8x32xf32>
    %83 = arith.extui %82 : vector<8x32xi1> to vector<8x32xi32>
    %84 = arith.sitofp %83 : vector<8x32xi32> to vector<8x32xf32>
    %85 = arith.addf %78, %84 : vector<8x32xf32>
    %cst_22 = arith.constant 1.000000e+00 : f32
    %86 = vector.broadcast %cst_22 : f32 to vector<8x32xf32>
    %87 = arith.subf %86, %84 : vector<8x32xf32>
    %88 = arith.addf %64, %87 : vector<8x32xf32>
    %89 = arith.cmpf ole, %10, %34 : vector<8x32xf32>
    %90 = arith.extui %89 : vector<8x32xi1> to vector<8x32xi32>
    %91 = arith.sitofp %90 : vector<8x32xi32> to vector<8x32xf32>
    %92 = arith.addf %45, %91 : vector<8x32xf32>
    %cst_23 = arith.constant 1.000000e+00 : f32
    %93 = vector.broadcast %cst_23 : f32 to vector<8x32xf32>
    %94 = arith.subf %93, %91 : vector<8x32xf32>
    %95 = arith.addf %74, %94 : vector<8x32xf32>
    %96 = arith.cmpf ole, %16, %34 : vector<8x32xf32>
    %97 = arith.extui %96 : vector<8x32xi1> to vector<8x32xi32>
    %98 = arith.sitofp %97 : vector<8x32xi32> to vector<8x32xf32>
    %99 = arith.addf %92, %98 : vector<8x32xf32>
    %cst_24 = arith.constant 1.000000e+00 : f32
    %100 = vector.broadcast %cst_24 : f32 to vector<8x32xf32>
    %101 = arith.subf %100, %98 : vector<8x32xf32>
    %102 = arith.addf %81, %101 : vector<8x32xf32>
    %103 = arith.cmpf ole, %22, %34 : vector<8x32xf32>
    %104 = arith.extui %103 : vector<8x32xi1> to vector<8x32xi32>
    %105 = arith.sitofp %104 : vector<8x32xi32> to vector<8x32xf32>
    %106 = arith.addf %99, %105 : vector<8x32xf32>
    %cst_25 = arith.constant 1.000000e+00 : f32
    %107 = vector.broadcast %cst_25 : f32 to vector<8x32xf32>
    %108 = arith.subf %107, %105 : vector<8x32xf32>
    %109 = arith.addf %88, %108 : vector<8x32xf32>
    %110 = arith.cmpf ole, %28, %34 : vector<8x32xf32>
    %111 = arith.extui %110 : vector<8x32xi1> to vector<8x32xi32>
    %112 = arith.sitofp %111 : vector<8x32xi32> to vector<8x32xf32>
    %113 = arith.addf %106, %112 : vector<8x32xf32>
    %cst_26 = arith.constant 1.000000e+00 : f32
    %114 = vector.broadcast %cst_26 : f32 to vector<8x32xf32>
    %115 = arith.subf %114, %112 : vector<8x32xf32>
    %116 = arith.addf %85, %115 : vector<8x32xf32>
    %117 = arith.cmpf ole, %10, %40 : vector<8x32xf32>
    %118 = arith.extui %117 : vector<8x32xi1> to vector<8x32xi32>
    %119 = arith.sitofp %118 : vector<8x32xi32> to vector<8x32xf32>
    %120 = arith.addf %46, %119 : vector<8x32xf32>
    %cst_27 = arith.constant 1.000000e+00 : f32
    %121 = vector.broadcast %cst_27 : f32 to vector<8x32xf32>
    %122 = arith.subf %121, %119 : vector<8x32xf32>
    %123 = arith.addf %95, %122 : vector<8x32xf32>
    %124 = arith.cmpf ole, %16, %40 : vector<8x32xf32>
    %125 = arith.extui %124 : vector<8x32xi1> to vector<8x32xi32>
    %126 = arith.sitofp %125 : vector<8x32xi32> to vector<8x32xf32>
    %127 = arith.addf %120, %126 : vector<8x32xf32>
    %cst_28 = arith.constant 1.000000e+00 : f32
    %128 = vector.broadcast %cst_28 : f32 to vector<8x32xf32>
    %129 = arith.subf %128, %126 : vector<8x32xf32>
    %130 = arith.addf %102, %129 : vector<8x32xf32>
    %131 = arith.cmpf ole, %22, %40 : vector<8x32xf32>
    %132 = arith.extui %131 : vector<8x32xi1> to vector<8x32xi32>
    %133 = arith.sitofp %132 : vector<8x32xi32> to vector<8x32xf32>
    %134 = arith.addf %127, %133 : vector<8x32xf32>
    %cst_29 = arith.constant 1.000000e+00 : f32
    %135 = vector.broadcast %cst_29 : f32 to vector<8x32xf32>
    %136 = arith.subf %135, %133 : vector<8x32xf32>
    %137 = arith.addf %109, %136 : vector<8x32xf32>
    %138 = arith.cmpf ole, %28, %40 : vector<8x32xf32>
    %139 = arith.extui %138 : vector<8x32xi1> to vector<8x32xi32>
    %140 = arith.sitofp %139 : vector<8x32xi32> to vector<8x32xf32>
    %141 = arith.addf %134, %140 : vector<8x32xf32>
    %cst_30 = arith.constant 1.000000e+00 : f32
    %142 = vector.broadcast %cst_30 : f32 to vector<8x32xf32>
    %143 = arith.subf %142, %140 : vector<8x32xf32>
    %144 = arith.addf %116, %143 : vector<8x32xf32>
    %145 = arith.cmpf ole, %34, %40 : vector<8x32xf32>
    %146 = arith.extui %145 : vector<8x32xi1> to vector<8x32xi32>
    %147 = arith.sitofp %146 : vector<8x32xi32> to vector<8x32xf32>
    %148 = arith.addf %141, %147 : vector<8x32xf32>
    %cst_31 = arith.constant 1.000000e+00 : f32
    %149 = vector.broadcast %cst_31 : f32 to vector<8x32xf32>
    %150 = arith.subf %149, %147 : vector<8x32xf32>
    %151 = arith.addf %113, %150 : vector<8x32xf32>
    %cst_32 = arith.constant 0.000000e+00 : f32
    %152 = vector.broadcast %cst_32 : f32 to vector<8x32xf32>
    %cst_33 = arith.constant 2.000000e+00 : f32
    %153 = vector.broadcast %cst_33 : f32 to vector<8x32xf32>
    %154 = arith.cmpf oge, %123, %153 : vector<8x32xf32>
    %cst_34 = arith.constant 4.000000e+00 : f32
    %155 = vector.broadcast %cst_34 : f32 to vector<8x32xf32>
    %156 = arith.cmpf olt, %123, %155 : vector<8x32xf32>
    %157 = arith.andi %154, %156 : vector<8x32xi1>
    %cst_35 = arith.constant 0.000000e+00 : f32
    %158 = vector.broadcast %cst_35 : f32 to vector<8x32xf32>
    %159 = arith.select %157, %10, %158 : vector<8x32xi1>, vector<8x32xf32>
    %160 = arith.addf %152, %159 : vector<8x32xf32>
    %cst_36 = arith.constant 2.000000e+00 : f32
    %161 = vector.broadcast %cst_36 : f32 to vector<8x32xf32>
    %162 = arith.cmpf oge, %130, %161 : vector<8x32xf32>
    %cst_37 = arith.constant 4.000000e+00 : f32
    %163 = vector.broadcast %cst_37 : f32 to vector<8x32xf32>
    %164 = arith.cmpf olt, %130, %163 : vector<8x32xf32>
    %165 = arith.andi %162, %164 : vector<8x32xi1>
    %cst_38 = arith.constant 0.000000e+00 : f32
    %166 = vector.broadcast %cst_38 : f32 to vector<8x32xf32>
    %167 = arith.select %165, %16, %166 : vector<8x32xi1>, vector<8x32xf32>
    %168 = arith.addf %160, %167 : vector<8x32xf32>
    %cst_39 = arith.constant 2.000000e+00 : f32
    %169 = vector.broadcast %cst_39 : f32 to vector<8x32xf32>
    %170 = arith.cmpf oge, %137, %169 : vector<8x32xf32>
    %cst_40 = arith.constant 4.000000e+00 : f32
    %171 = vector.broadcast %cst_40 : f32 to vector<8x32xf32>
    %172 = arith.cmpf olt, %137, %171 : vector<8x32xf32>
    %173 = arith.andi %170, %172 : vector<8x32xi1>
    %cst_41 = arith.constant 0.000000e+00 : f32
    %174 = vector.broadcast %cst_41 : f32 to vector<8x32xf32>
    %175 = arith.select %173, %22, %174 : vector<8x32xi1>, vector<8x32xf32>
    %176 = arith.addf %168, %175 : vector<8x32xf32>
    %cst_42 = arith.constant 2.000000e+00 : f32
    %177 = vector.broadcast %cst_42 : f32 to vector<8x32xf32>
    %178 = arith.cmpf oge, %144, %177 : vector<8x32xf32>
    %cst_43 = arith.constant 4.000000e+00 : f32
    %179 = vector.broadcast %cst_43 : f32 to vector<8x32xf32>
    %180 = arith.cmpf olt, %144, %179 : vector<8x32xf32>
    %181 = arith.andi %178, %180 : vector<8x32xi1>
    %cst_44 = arith.constant 0.000000e+00 : f32
    %182 = vector.broadcast %cst_44 : f32 to vector<8x32xf32>
    %183 = arith.select %181, %28, %182 : vector<8x32xi1>, vector<8x32xf32>
    %184 = arith.addf %176, %183 : vector<8x32xf32>
    %cst_45 = arith.constant 2.000000e+00 : f32
    %185 = vector.broadcast %cst_45 : f32 to vector<8x32xf32>
    %186 = arith.cmpf oge, %151, %185 : vector<8x32xf32>
    %cst_46 = arith.constant 4.000000e+00 : f32
    %187 = vector.broadcast %cst_46 : f32 to vector<8x32xf32>
    %188 = arith.cmpf olt, %151, %187 : vector<8x32xf32>
    %189 = arith.andi %186, %188 : vector<8x32xi1>
    %cst_47 = arith.constant 0.000000e+00 : f32
    %190 = vector.broadcast %cst_47 : f32 to vector<8x32xf32>
    %191 = arith.select %189, %34, %190 : vector<8x32xi1>, vector<8x32xf32>
    %192 = arith.addf %184, %191 : vector<8x32xf32>
    %cst_48 = arith.constant 2.000000e+00 : f32
    %193 = vector.broadcast %cst_48 : f32 to vector<8x32xf32>
    %194 = arith.cmpf oge, %148, %193 : vector<8x32xf32>
    %cst_49 = arith.constant 4.000000e+00 : f32
    %195 = vector.broadcast %cst_49 : f32 to vector<8x32xf32>
    %196 = arith.cmpf olt, %148, %195 : vector<8x32xf32>
    %197 = arith.andi %194, %196 : vector<8x32xi1>
    %cst_50 = arith.constant 0.000000e+00 : f32
    %198 = vector.broadcast %cst_50 : f32 to vector<8x32xf32>
    %199 = arith.select %197, %40, %198 : vector<8x32xi1>, vector<8x32xf32>
    %200 = arith.addf %192, %199 : vector<8x32xf32>
    %cst_51 = arith.constant 5.000000e-01 : f32
    %201 = vector.broadcast %cst_51 : f32 to vector<8x32xf32>
    %202 = arith.mulf %200, %201 : vector<8x32xf32>
    %c0_52 = arith.constant 0 : index
    %c0_53 = arith.constant 0 : index
    %203 = vector.load %arg3[%c0_52, %c0_53] : memref<8x32xf32, #tpu.memory_space<vmem>>, vector<8x32xf32>
    tpu.vector_store %arg3[%c0_52, %c0_53], %202 {strides = array<i32>} : memref<8x32xf32, #tpu.memory_space<vmem>>, vector<8x32xf32>,
    return
  }
}

</mosaic_0001>

<llo_original>
// kernel: tpu_custom_call.1
$region0: #{tpu_custom_call.1}
  #allocation0 [shape = 'u32[]', space=smem, size = 0x4, offset = 0x4, fixed_abs, tag = 'smem constant byte address 0x4 - core index']
  #allocation1 [shape = 'u32[144,128]{1,0:T(1,128)}', space=vmem, size = 0x12000, scoped, tag = 'internal scratch']
  %s0 = inlined_call_operand.hbm [shape: s32[8,6], index: 0, kind: input, shape index: {}]
  %s1 = inlined_call_operand.hbm [shape: f32[8,16], index: 1, kind: input, shape index: {}]
  %s2 = inlined_call_operand.hbm [shape: f32[16,32], index: 2, kind: input, shape index: {}]
  %s3 = inlined_call_operand.hbm [shape: f32[8,32], index: 3, kind: output, shape index: {}]
  %s4 = sld [smem:[#allocation0]]
  $region34: #{tpu_custom_call.1} parent=0
    _
  %s6 = ssub.s32 1, %s4
  %s7 = scalar_select 0, %s6, %s4
  $region1: #{tpu_custom_call.1} parent=0
    #allocation2 [shape = 'u8[4096]{0}', space=vmem, size = 0x1000, scoped, tag = 'input window, operand 0, single buffered']
    #allocation3 [shape = 's32[1]{0}', space=sflag, size = 0x4, scoped, tag = 'scoped memory for tpu_custom_call.1']
    #allocation4 [shape = 's32[1]{0}', space=sflag, size = 0x4, scoped, tag = 'scoped memory for tpu_custom_call.1']
    #allocation5 [shape = 'u8[4096]{0}', space=vmem, size = 0x1000, scoped, tag = 'input window, operand 1, single buffered']
    #allocation6 [shape = 's32[1]{0}', space=sflag, size = 0x4, scoped, tag = 'scoped memory for tpu_custom_call.1']
    #allocation7 [shape = 'u8[8192]{0}', space=vmem, size = 0x2000, scoped, tag = 'input window, operand 2, single buffered']
    #allocation8 [shape = 'u8[4096]{0}', space=vmem, size = 0x1000, scoped, tag = 'output window, operand 0, single buffered']
    %8 = vsyncpa [#allocation3], 0
    %9 = vsyncpa [#allocation6], 0
    %10 = vsyncpa [#allocation4], 0
    // Predicated region
    $region2: #{tpu_custom_call.1} parent=1 // pred_check
      _
    $region3: #{tpu_custom_call.1} parent=1 // pred_check_branch
      %12 = sbr.rel (0) target = $region5
    $region4: #{tpu_custom_call.1} parent=1 // pred_region
      %s14 = ssub.s32 128, 128
      %15 = vsyncadd [#allocation3], %s14
      %s17 = sshll.u32 [#allocation2], 4
      %s18 = int_to_ptr.vmem [resolvable:$true] %s17
      %20 = dma.hbm_to_vmem [thread:$0]  %s0, 128, %s18, [#allocation3]
    $region5: #{tpu_custom_call.1} parent=1 // pred_fallthru
      _
    // Predicated region
    $region6: #{tpu_custom_call.1} parent=1 // pred_check
      _
    $region7: #{tpu_custom_call.1} parent=1 // pred_check_branch
      %22 = sbr.rel (0) target = $region9
    $region8: #{tpu_custom_call.1} parent=1 // pred_region
      %s24 = ssub.s32 128, 128
      %25 = vsyncadd [#allocation6], %s24
      %s27 = sshll.u32 [#allocation5], 4
      %s28 = int_to_ptr.vmem [resolvable:$true] %s27
      %30 = dma.hbm_to_vmem [thread:$0]  %s1, 128, %s28, [#allocation6]
    $region9: #{tpu_custom_call.1} parent=1 // pred_fallthru
      _
    // Predicated region
    $region10: #{tpu_custom_call.1} parent=1 // pred_check
      _
    $region11: #{tpu_custom_call.1} parent=1 // pred_check_branch
      %32 = sbr.rel (0) target = $region13
    $region12: #{tpu_custom_call.1} parent=1 // pred_region
      %s34 = ssub.s32 256, 256
      %35 = vsyncadd [#allocation6], %s34
      %s36 = sshll.u32 [#allocation7], 4
      %s37 = int_to_ptr.vmem [resolvable:$true] %s36
      %42 = dma.hbm_to_vmem [thread:$0]  %s2, 256, %s37, [#allocation6], 128, 128, 8
    $region13: #{tpu_custom_call.1} parent=1 // pred_fallthru
      _
    // Predicated region
    $region14: #{tpu_custom_call.1} parent=1 // pred_check
      _
    $region15: #{tpu_custom_call.1} parent=1 // pred_check_branch
      %44 = sbr.rel (0) target = $region17
    $region16: #{tpu_custom_call.1} parent=1 // pred_region
      %45 = dma.done [#allocation3], 128
    $region17: #{tpu_custom_call.1} parent=1 // pred_fallthru
      _
    // Predicated region
    $region18: #{tpu_custom_call.1} parent=1 // pred_check
      _
    $region19: #{tpu_custom_call.1} parent=1 // pred_check_branch
      %47 = sbr.rel (0) target = $region21
    $region20: #{tpu_custom_call.1} parent=1 // pred_region
      %48 = dma.done [#allocation6], 128
    $region21: #{tpu_custom_call.1} parent=1 // pred_fallthru
      _
    // Predicated region
    $region22: #{tpu_custom_call.1} parent=1 // pred_check
      _
    $region23: #{tpu_custom_call.1} parent=1 // pred_check_branch
      %50 = sbr.rel (0) target = $region25
    $region24: #{tpu_custom_call.1} parent=1 // pred_region
      %51 = dma.done [#allocation6], 256
    $region25: #{tpu_custom_call.1} parent=1 // pred_fallthru
      _
    %v52 = vld [vmem:[#allocation5] sm:$0xff]
    %v53 = vld [vmem:[#allocation7] sm:$0xff]
    %v54 = vld [vmem:[#allocation7 + $0x8] sm:$0xff]
    %vm55 = vcmask 130048
    %v57 = vsel %vm55, %v52, 0
    %59 = vmatprep.subr.mxu0 0.0
    %60 = vmatpush1.msra.mxu0 %v53
    %61 = vmatprep.subr.mxu0 0.0
    %62 = vmatpush1.msra.mxu0 %v54
    %63 = vmatprep.subr.mxu0 0.0
    %64 = vmatpush1.msra.mxu0 0.0
    %65 = vmatprep.subr.mxu0 0.0
    %66 = vmatpush1.msra.mxu0 0.0
    %67 = vmatprep.subr.mxu0 0.0
    %68 = vmatpush1.msra.mxu0 0.0
    %69 = vmatprep.subr.mxu0 0.0
    %70 = vmatpush1.msra.mxu0 0.0
    %71 = vmatprep.subr.mxu0 0.0
    %72 = vmatpush1.msra.mxu0 0.0
    %73 = vmatprep.subr.mxu0 0.0
    %74 = vmatpush1.msra.mxu0 0.0
    %75 = vmatprep.subr.mxu0 0.0
    %76 = vmatpush1.msra.mxu0 0.0
    %77 = vmatprep.subr.mxu0 0.0
    %78 = vmatpush1.msra.mxu0 0.0
    %79 = vmatprep.subr.mxu0 0.0
    %80 = vmatpush1.msra.mxu0 0.0
    %81 = vmatprep.subr.mxu0 0.0
    %82 = vmatpush1.msra.mxu0 0.0
    %83 = vmatprep.subr.mxu0 0.0
    %84 = vmatpush1.msra.mxu0 0.0
    %85 = vmatprep.subr.mxu0 0.0
    %86 = vmatpush1.msra.mxu0 0.0
    %87 = vmatprep.subr.mxu0 0.0
    %88 = vmatpush1.msra.mxu0 0.0
    %89 = vmatprep.subr.mxu0 0.0
    %90 = vmatpush1.msra.mxu0 0.0
    %91 = vmatprep.subr.mxu0 0.0
    %92 = vmatpush1.msra.mxu0 0.0
    %93 = vmatprep.subr.mxu0 0.0
    %94 = vmatpush1.msra.mxu0 0.0
    %95 = vmatprep.subr.mxu0 0.0
    %96 = vmatpush1.msra.mxu0 0.0
    %97 = vmatprep.subr.mxu0 0.0
    %98 = vmatpush1.msra.mxu0 0.0
    %99 = vmatprep.subr.mxu0 0.0
    %100 = vmatpush1.msra.mxu0 0.0
    %101 = vmatprep.subr.mxu0 0.0
    %102 = vmatpush1.msra.mxu0 0.0
    %103 = vmatprep.subr.mxu0 0.0
    %104 = vmatpush1.msra.mxu0 0.0
    %105 = vmatprep.subr.mxu0 0.0
    %106 = vmatpush1.msra.mxu0 0.0
    %107 = vmatprep.subr.mxu0 0.0
    %108 = vmatpush1.msra.mxu0 0.0
    %109 = vmatprep.subr.mxu0 0.0
    %110 = vmatpush1.msra.mxu0 0.0
    %111 = vmatprep.subr.mxu0 0.0
    %112 = vmatpush1.msra.mxu0 0.0
    %113 = vmatprep.subr.mxu0 0.0
    %114 = vmatpush1.msra.mxu0 0.0
    %115 = vmatprep.subr.mxu0 0.0
    %116 = vmatpush1.msra.mxu0 0.0
    %117 = vmatprep.subr.mxu0 0.0
    %118 = vmatpush1.msra.mxu0 0.0
    %119 = vmatprep.subr.mxu0 0.0
    %120 = vmatpush1.msra.mxu0 0.0
    %121 = vmatprep.subr.mxu0 0.0
    %122 = vmatpush1.msra.mxu0 0.0
    %123 = vmatprep.mubr.f32.mxu0 0.0
    %124 = vmatmul.mubr.f32.gmra.mrb[0].mxu0 %v57
    %v125 = vpop.f32.mrb[0].mxu0
    %v126 = vadd.f32 0.0, %v125
    %v127 = vpop.f32.mrb[0].mxu0
    %128 = vdwg.mxu0
    %v129 = vld [vmem:[#allocation2] sm:$0xff]
    %v130 = vlaneseq
    %v131 = vand.u32 %v130, 127
    %132 = vset.pattern.permute.xlu0 0
    %133 = vperm.xlu0 %132, %v129
    %v134 = vpop.permute.xlu0 %133
    %vm135 = vcmp.eq.s32.totalorder %v134, %v131
    %v136 = vsel %vm135, 1, 0
    %v137 = vcvt.s32.f32 %v136
    %vm138 = vcmask 64512
    %v140 = vsel %vm138, %v137, 0
    %142 = vmatprep.subr.mxu0 0.0
    %143 = vmatpush1.msra.mxu0 %v126
    %144 = vmatprep.subr.mxu0 0.0
    %145 = vmatpush1.msra.mxu0 0.0
    %146 = vmatprep.subr.mxu0 0.0
    %147 = vmatpush1.msra.mxu0 0.0
    %148 = vmatprep.subr.mxu0 0.0
    %149 = vmatpush1.msra.mxu0 0.0
    %150 = vmatprep.subr.mxu0 0.0
    %151 = vmatpush1.msra.mxu0 0.0
    %152 = vmatprep.subr.mxu0 0.0
    %153 = vmatpush1.msra.mxu0 0.0
    %154 = vmatprep.subr.mxu0 0.0
    %155 = vmatpush1.msra.mxu0 0.0
    %156 = vmatprep.subr.mxu0 0.0
    %157 = vmatpush1.msra.mxu0 0.0
    %158 = vmatprep.subr.mxu0 0.0
    %159 = vmatpush1.msra.mxu0 0.0
    %160 = vmatprep.subr.mxu0 0.0
    %161 = vmatpush1.msra.mxu0 0.0
    %162 = vmatprep.subr.mxu0 0.0
    %163 = vmatpush1.msra.mxu0 0.0
    %164 = vmatprep.subr.mxu0 0.0
    %165 = vmatpush1.msra.mxu0 0.0
    %166 = vmatprep.subr.mxu0 0.0
    %167 = vmatpush1.msra.mxu0 0.0
    %168 = vmatprep.subr.mxu0 0.0
    %169 = vmatpush1.msra.mxu0 0.0
    %170 = vmatprep.subr.mxu0 0.0
    %171 = vmatpush1.msra.mxu0 0.0
    %172 = vmatprep.subr.mxu0 0.0
    %173 = vmatpush1.msra.mxu0 0.0
    %174 = vmatprep.subr.mxu0 0.0
    %175 = vmatpush1.msra.mxu0 0.0
    %176 = vmatprep.subr.mxu0 0.0
    %177 = vmatpush1.msra.mxu0 0.0
    %178 = vmatprep.subr.mxu0 0.0
    %179 = vmatpush1.msra.mxu0 0.0
    %180 = vmatprep.subr.mxu0 0.0
    %181 = vmatpush1.msra.mxu0 0.0
    %182 = vmatprep.subr.mxu0 0.0
    %183 = vmatpush1.msra.mxu0 0.0
    %184 = vmatprep.subr.mxu0 0.0
    %185 = vmatpush1.msra.mxu0 0.0
    %186 = vmatprep.subr.mxu0 0.0
    %187 = vmatpush1.msra.mxu0 0.0
    %188 = vmatprep.subr.mxu0 0.0
    %189 = vmatpush1.msra.mxu0 0.0
    %190 = vmatprep.subr.mxu0 0.0
    %191 = vmatpush1.msra.mxu0 0.0
    %192 = vmatprep.subr.mxu0 0.0
    %193 = vmatpush1.msra.mxu0 0.0
    %194 = vmatprep.subr.mxu0 0.0
    %195 = vmatpush1.msra.mxu0 0.0
    %196 = vmatprep.subr.mxu0 0.0
    %197 = vmatpush1.msra.mxu0 0.0
    %198 = vmatprep.subr.mxu0 0.0
    %199 = vmatpush1.msra.mxu0 0.0
    %200 = vmatprep.subr.mxu0 0.0
    %201 = vmatpush1.msra.mxu0 0.0
    %202 = vmatprep.subr.mxu0 0.0
    %203 = vmatpush1.msra.mxu0 0.0
    %204 = vmatprep.subr.mxu0 0.0
    %205 = vmatpush1.msra.mxu0 0.0
    %206 = vmatprep.mubr.f32.mxu0 0.0
    %207 = vmatmul.mubr.f32.gmra.mrb[0].mxu0 %v140
    %v208 = vpop.f32.mrb[0].mxu0
    %v209 = vadd.f32 0.0, %v208
    %v210 = vpop.f32.mrb[0].mxu0
    %211 = vdwg.mxu0
    %212 = vset.pattern.permute.xlu0 1
    %213 = vperm.xlu0 %212, %v129
    %v214 = vpop.permute.xlu0 %213
    %vm215 = vcmp.eq.s32.totalorder %v214, %v131
    %v216 = vsel %vm215, 1, 0
    %v217 = vcvt.s32.f32 %v216
    %v219 = vsel %vm138, %v217, 0
    %221 = vmatprep.subr.mxu0 0.0
    %222 = vmatpush1.msra.mxu0 %v126
    %223 = vmatprep.subr.mxu0 0.0
    %224 = vmatpush1.msra.mxu0 0.0
    %225 = vmatprep.subr.mxu0 0.0
    %226 = vmatpush1.msra.mxu0 0.0
    %227 = vmatprep.subr.mxu0 0.0
    %228 = vmatpush1.msra.mxu0 0.0
    %229 = vmatprep.subr.mxu0 0.0
    %230 = vmatpush1.msra.mxu0 0.0
    %231 = vmatprep.subr.mxu0 0.0
    %232 = vmatpush1.msra.mxu0 0.0
    %233 = vmatprep.subr.mxu0 0.0
    %234 = vmatpush1.msra.mxu0 0.0
    %235 = vmatprep.subr.mxu0 0.0
    %236 = vmatpush1.msra.mxu0 0.0
    %237 = vmatprep.subr.mxu0 0.0
    %238 = vmatpush1.msra.mxu0 0.0
    %239 = vmatprep.subr.mxu0 0.0
    %240 = vmatpush1.msra.mxu0 0.0
    %241 = vmatprep.subr.mxu0 0.0
    %242 = vmatpush1.msra.mxu0 0.0
    %243 = vmatprep.subr.mxu0 0.0
    %244 = vmatpush1.msra.mxu0 0.0
    %245 = vmatprep.subr.mxu0 0.0
    %246 = vmatpush1.msra.mxu0 0.0
    %247 = vmatprep.subr.mxu0 0.0
    %248 = vmatpush1.msra.mxu0 0.0
    %249 = vmatprep.subr.mxu0 0.0
    %250 = vmatpush1.msra.mxu0 0.0
    %251 = vmatprep.subr.mxu0 0.0
    %252 = vmatpush1.msra.mxu0 0.0
    %253 = vmatprep.subr.mxu0 0.0
    %254 = vmatpush1.msra.mxu0 0.0
    %255 = vmatprep.subr.mxu0 0.0
    %256 = vmatpush1.msra.mxu0 0.0
    %257 = vmatprep.subr.mxu0 0.0
    %258 = vmatpush1.msra.mxu0 0.0
    %259 = vmatprep.subr.mxu0 0.0
    %260 = vmatpush1.msra.mxu0 0.0
    %261 = vmatprep.subr.mxu0 0.0
    %262 = vmatpush1.msra.mxu0 0.0
    %263 = vmatprep.subr.mxu0 0.0
    %264 = vmatpush1.msra.mxu0 0.0
    %265 = vmatprep.subr.mxu0 0.0
    %266 = vmatpush1.msra.mxu0 0.0
    %267 = vmatprep.subr.mxu0 0.0
    %268 = vmatpush1.msra.mxu0 0.0
    %269 = vmatprep.subr.mxu0 0.0
    %270 = vmatpush1.msra.mxu0 0.0
    %271 = vmatprep.subr.mxu0 0.0
    %272 = vmatpush1.msra.mxu0 0.0
    %273 = vmatprep.subr.mxu0 0.0
    %274 = vmatpush1.msra.mxu0 0.0
    %275 = vmatprep.subr.mxu0 0.0
    %276 = vmatpush1.msra.mxu0 0.0
    %277 = vmatprep.subr.mxu0 0.0
    %278 = vmatpush1.msra.mxu0 0.0
    %279 = vmatprep.subr.mxu0 0.0
    %280 = vmatpush1.msra.mxu0 0.0
    %281 = vmatprep.subr.mxu0 0.0
    %282 = vmatpush1.msra.mxu0 0.0
    %283 = vmatprep.subr.mxu0 0.0
    %284 = vmatpush1.msra.mxu0 0.0
    %285 = vmatprep.mubr.f32.mxu0 0.0
    %286 = vmatmul.mubr.f32.gmra.mrb[0].mxu0 %v219
    %v287 = vpop.f32.mrb[0].mxu0
    %v288 = vadd.f32 0.0, %v287
    %v289 = vpop.f32.mrb[0].mxu0
    %290 = vdwg.mxu0
    %291 = vset.pattern.permute.xlu0 2
    %292 = vperm.xlu0 %291, %v129
    %v293 = vpop.permute.xlu0 %292
    %vm294 = vcmp.eq.s32.totalorder %v293, %v131
    %v295 = vsel %vm294, 1, 0
    %v296 = vcvt.s32.f32 %v295
    %v298 = vsel %vm138, %v296, 0
    %300 = vmatprep.subr.mxu0 0.0
    %301 = vmatpush1.msra.mxu0 %v126
    %302 = vmatprep.subr.mxu0 0.0
    %303 = vmatpush1.msra.mxu0 0.0
    %304 = vmatprep.subr.mxu0 0.0
    %305 = vmatpush1.msra.mxu0 0.0
    %306 = vmatprep.subr.mxu0 0.0
    %307 = vmatpush1.msra.mxu0 0.0
    %308 = vmatprep.subr.mxu0 0.0
    %309 = vmatpush1.msra.mxu0 0.0
    %310 = vmatprep.subr.mxu0 0.0
    %311 = vmatpush1.msra.mxu0 0.0
    %312 = vmatprep.subr.mxu0 0.0
    %313 = vmatpush1.msra.mxu0 0.0
    %314 = vmatprep.subr.mxu0 0.0
    %315 = vmatpush1.msra.mxu0 0.0
    %316 = vmatprep.subr.mxu0 0.0
    %317 = vmatpush1.msra.mxu0 0.0
    %318 = vmatprep.subr.mxu0 0.0
    %319 = vmatpush1.msra.mxu0 0.0
    %320 = vmatprep.subr.mxu0 0.0
    %321 = vmatpush1.msra.mxu0 0.0
    %322 = vmatprep.subr.mxu0 0.0
    %323 = vmatpush1.msra.mxu0 0.0
    %324 = vmatprep.subr.mxu0 0.0
    %325 = vmatpush1.msra.mxu0 0.0
    %326 = vmatprep.subr.mxu0 0.0
    %327 = vmatpush1.msra.mxu0 0.0
    %328 = vmatprep.subr.mxu0 0.0
    %329 = vmatpush1.msra.mxu0 0.0
    %330 = vmatprep.subr.mxu0 0.0
    %331 = vmatpush1.msra.mxu0 0.0
    %332 = vmatprep.subr.mxu0 0.0
    %333 = vmatpush1.msra.mxu0 0.0
    %334 = vmatprep.subr.mxu0 0.0
    %335 = vmatpush1.msra.mxu0 0.0
    %336 = vmatprep.subr.mxu0 0.0
    %337 = vmatpush1.msra.mxu0 0.0
    %338 = vmatprep.subr.mxu0 0.0
    %339 = vmatpush1.msra.mxu0 0.0
    %340 = vmatprep.subr.mxu0 0.0
    %341 = vmatpush1.msra.mxu0 0.0
    %342 = vmatprep.subr.mxu0 0.0
    %343 = vmatpush1.msra.mxu0 0.0
    %344 = vmatprep.subr.mxu0 0.0
    %345 = vmatpush1.msra.mxu0 0.0
    %346 = vmatprep.subr.mxu0 0.0
    %347 = vmatpush1.msra.mxu0 0.0
    %348 = vmatprep.subr.mxu0 0.0
    %349 = vmatpush1.msra.mxu0 0.0
    %350 = vmatprep.subr.mxu0 0.0
    %351 = vmatpush1.msra.mxu0 0.0
    %352 = vmatprep.subr.mxu0 0.0
    %353 = vmatpush1.msra.mxu0 0.0
    %354 = vmatprep.subr.mxu0 0.0
    %355 = vmatpush1.msra.mxu0 0.0
    %356 = vmatprep.subr.mxu0 0.0
    %357 = vmatpush1.msra.mxu0 0.0
    %358 = vmatprep.subr.mxu0 0.0
    %359 = vmatpush1.msra.mxu0 0.0
    %360 = vmatprep.subr.mxu0 0.0
    %361 = vmatpush1.msra.mxu0 0.0
    %362 = vmatprep.subr.mxu0 0.0
    %363 = vmatpush1.msra.mxu0 0.0
    %364 = vmatprep.mubr.f32.mxu0 0.0
    %365 = vmatmul.mubr.f32.gmra.mrb[0].mxu0 %v298
    %v366 = vpop.f32.mrb[0].mxu0
    %v367 = vadd.f32 0.0, %v366
    %v368 = vpop.f32.mrb[0].mxu0
    %369 = vdwg.mxu0
    %370 = vset.pattern.permute.xlu0 3
    %371 = vperm.xlu0 %370, %v129
    %v372 = vpop.permute.xlu0 %371
    %vm373 = vcmp.eq.s32.totalorder %v372, %v131
    %v374 = vsel %vm373, 1, 0
    %v375 = vcvt.s32.f32 %v374
    %v377 = vsel %vm138, %v375, 0
    %379 = vmatprep.subr.mxu0 0.0
    %380 = vmatpush1.msra.mxu0 %v126
    %381 = vmatprep.subr.mxu0 0.0
    %382 = vmatpush1.msra.mxu0 0.0
    %383 = vmatprep.subr.mxu0 0.0
    %384 = vmatpush1.msra.mxu0 0.0
    %385 = vmatprep.subr.mxu0 0.0
    %386 = vmatpush1.msra.mxu0 0.0
    %387 = vmatprep.subr.mxu0 0.0
    %388 = vmatpush1.msra.mxu0 0.0
    %389 = vmatprep.subr.mxu0 0.0
    %390 = vmatpush1.msra.mxu0 0.0
    %391 = vmatprep.subr.mxu0 0.0
    %392 = vmatpush1.msra.mxu0 0.0
    %393 = vmatprep.subr.mxu0 0.0
    %394 = vmatpush1.msra.mxu0 0.0
    %395 = vmatprep.subr.mxu0 0.0
    %396 = vmatpush1.msra.mxu0 0.0
    %397 = vmatprep.subr.mxu0 0.0
    %398 = vmatpush1.msra.mxu0 0.0
    %399 = vmatprep.subr.mxu0 0.0
    %400 = vmatpush1.msra.mxu0 0.0
    %401 = vmatprep.subr.mxu0 0.0
    %402 = vmatpush1.msra.mxu0 0.0
    %403 = vmatprep.subr.mxu0 0.0
    %404 = vmatpush1.msra.mxu0 0.0
    %405 = vmatprep.subr.mxu0 0.0
    %406 = vmatpush1.msra.mxu0 0.0
    %407 = vmatprep.subr.mxu0 0.0
    %408 = vmatpush1.msra.mxu0 0.0
    %409 = vmatprep.subr.mxu0 0.0
    %410 = vmatpush1.msra.mxu0 0.0
    %411 = vmatprep.subr.mxu0 0.0
    %412 = vmatpush1.msra.mxu0 0.0
    %413 = vmatprep.subr.mxu0 0.0
    %414 = vmatpush1.msra.mxu0 0.0
    %415 = vmatprep.subr.mxu0 0.0
    %416 = vmatpush1.msra.mxu0 0.0
    %417 = vmatprep.subr.mxu0 0.0
    %418 = vmatpush1.msra.mxu0 0.0
    %419 = vmatprep.subr.mxu0 0.0
    %420 = vmatpush1.msra.mxu0 0.0
    %421 = vmatprep.subr.mxu0 0.0
    %422 = vmatpush1.msra.mxu0 0.0
    %423 = vmatprep.subr.mxu0 0.0
    %424 = vmatpush1.msra.mxu0 0.0
    %425 = vmatprep.subr.mxu0 0.0
    %426 = vmatpush1.msra.mxu0 0.0
    %427 = vmatprep.subr.mxu0 0.0
    %428 = vmatpush1.msra.mxu0 0.0
    %429 = vmatprep.subr.mxu0 0.0
    %430 = vmatpush1.msra.mxu0 0.0
    %431 = vmatprep.subr.mxu0 0.0
    %432 = vmatpush1.msra.mxu0 0.0
    %433 = vmatprep.subr.mxu0 0.0
    %434 = vmatpush1.msra.mxu0 0.0
    %435 = vmatprep.subr.mxu0 0.0
    %436 = vmatpush1.msra.mxu0 0.0
    %437 = vmatprep.subr.mxu0 0.0
    %438 = vmatpush1.msra.mxu0 0.0
    %439 = vmatprep.subr.mxu0 0.0
    %440 = vmatpush1.msra.mxu0 0.0
    %441 = vmatprep.subr.mxu0 0.0
    %442 = vmatpush1.msra.mxu0 0.0
    %443 = vmatprep.mubr.f32.mxu0 0.0
    %444 = vmatmul.mubr.f32.gmra.mrb[0].mxu0 %v377
    %v445 = vpop.f32.mrb[0].mxu0
    %v446 = vadd.f32 0.0, %v445
    %v447 = vpop.f32.mrb[0].mxu0
    %448 = vdwg.mxu0
    %449 = vset.pattern.permute.xlu0 4
    %450 = vperm.xlu0 %449, %v129
    %v451 = vpop.permute.xlu0 %450
    %vm452 = vcmp.eq.s32.totalorder %v451, %v131
    %v453 = vsel %vm452, 1, 0
    %v454 = vcvt.s32.f32 %v453
    %v456 = vsel %vm138, %v454, 0
    %458 = vmatprep.subr.mxu0 0.0
    %459 = vmatpush1.msra.mxu0 %v126
    %460 = vmatprep.subr.mxu0 0.0
    %461 = vmatpush1.msra.mxu0 0.0
    %462 = vmatprep.subr.mxu0 0.0
    %463 = vmatpush1.msra.mxu0 0.0
    %464 = vmatprep.subr.mxu0 0.0
    %465 = vmatpush1.msra.mxu0 0.0
    %466 = vmatprep.subr.mxu0 0.0
    %467 = vmatpush1.msra.mxu0 0.0
    %468 = vmatprep.subr.mxu0 0.0
    %469 = vmatpush1.msra.mxu0 0.0
    %470 = vmatprep.subr.mxu0 0.0
    %471 = vmatpush1.msra.mxu0 0.0
    %472 = vmatprep.subr.mxu0 0.0
    %473 = vmatpush1.msra.mxu0 0.0
    %474 = vmatprep.subr.mxu0 0.0
    %475 = vmatpush1.msra.mxu0 0.0
    %476 = vmatprep.subr.mxu0 0.0
    %477 = vmatpush1.msra.mxu0 0.0
    %478 = vmatprep.subr.mxu0 0.0
    %479 = vmatpush1.msra.mxu0 0.0
    %480 = vmatprep.subr.mxu0 0.0
    %481 = vmatpush1.msra.mxu0 0.0
    %482 = vmatprep.subr.mxu0 0.0
    %483 = vmatpush1.msra.mxu0 0.0
    %484 = vmatprep.subr.mxu0 0.0
    %485 = vmatpush1.msra.mxu0 0.0
    %486 = vmatprep.subr.mxu0 0.0
    %487 = vmatpush1.msra.mxu0 0.0
    %488 = vmatprep.subr.mxu0 0.0
    %489 = vmatpush1.msra.mxu0 0.0
    %490 = vmatprep.subr.mxu0 0.0
    %491 = vmatpush1.msra.mxu0 0.0
    %492 = vmatprep.subr.mxu0 0.0
    %493 = vmatpush1.msra.mxu0 0.0
    %494 = vmatprep.subr.mxu0 0.0
    %495 = vmatpush1.msra.mxu0 0.0
    %496 = vmatprep.subr.mxu0 0.0
    %497 = vmatpush1.msra.mxu0 0.0
    %498 = vmatprep.subr.mxu0 0.0
    %499 = vmatpush1.msra.mxu0 0.0
    %500 = vmatprep.subr.mxu0 0.0
    %501 = vmatpush1.msra.mxu0 0.0
    %502 = vmatprep.subr.mxu0 0.0
    %503 = vmatpush1.msra.mxu0 0.0
    %504 = vmatprep.subr.mxu0 0.0
    %505 = vmatpush1.msra.mxu0 0.0
    %506 = vmatprep.subr.mxu0 0.0
    %507 = vmatpush1.msra.mxu0 0.0
    %508 = vmatprep.subr.mxu0 0.0
    %509 = vmatpush1.msra.mxu0 0.0
    %510 = vmatprep.subr.mxu0 0.0
    %511 = vmatpush1.msra.mxu0 0.0
    %512 = vmatprep.subr.mxu0 0.0
    %513 = vmatpush1.msra.mxu0 0.0
    %514 = vmatprep.subr.mxu0 0.0
    %515 = vmatpush1.msra.mxu0 0.0
    %516 = vmatprep.subr.mxu0 0.0
    %517 = vmatpush1.msra.mxu0 0.0
    %518 = vmatprep.subr.mxu0 0.0
    %519 = vmatpush1.msra.mxu0 0.0
    %520 = vmatprep.subr.mxu0 0.0
    %521 = vmatpush1.msra.mxu0 0.0
    %522 = vmatprep.mubr.f32.mxu0 0.0
    %523 = vmatmul.mubr.f32.gmra.mrb[0].mxu0 %v456
    %v524 = vpop.f32.mrb[0].mxu0
    %v525 = vadd.f32 0.0, %v524
    %v526 = vpop.f32.mrb[0].mxu0
    %527 = vdwg.mxu0
    %528 = vset.pattern.permute.xlu0 5
    %529 = vperm.xlu0 %528, %v129
    %v530 = vpop.permute.xlu0 %529
    %vm531 = vcmp.eq.s32.totalorder %v530, %v131
    %v532 = vsel %vm531, 1, 0
    %v533 = vcvt.s32.f32 %v532
    %v535 = vsel %vm138, %v533, 0
    %537 = vmatprep.subr.mxu0 0.0
    %538 = vmatpush1.msra.mxu0 %v126
    %539 = vmatprep.subr.mxu0 0.0
    %540 = vmatpush1.msra.mxu0 0.0
    %541 = vmatprep.subr.mxu0 0.0
    %542 = vmatpush1.msra.mxu0 0.0
    %543 = vmatprep.subr.mxu0 0.0
    %544 = vmatpush1.msra.mxu0 0.0
    %545 = vmatprep.subr.mxu0 0.0
    %546 = vmatpush1.msra.mxu0 0.0
    %547 = vmatprep.subr.mxu0 0.0
    %548 = vmatpush1.msra.mxu0 0.0
    %549 = vmatprep.subr.mxu0 0.0
    %550 = vmatpush1.msra.mxu0 0.0
    %551 = vmatprep.subr.mxu0 0.0
    %552 = vmatpush1.msra.mxu0 0.0
    %553 = vmatprep.subr.mxu0 0.0
    %554 = vmatpush1.msra.mxu0 0.0
    %555 = vmatprep.subr.mxu0 0.0
    %556 = vmatpush1.msra.mxu0 0.0
    %557 = vmatprep.subr.mxu0 0.0
    %558 = vmatpush1.msra.mxu0 0.0
    %559 = vmatprep.subr.mxu0 0.0
    %560 = vmatpush1.msra.mxu0 0.0
    %561 = vmatprep.subr.mxu0 0.0
    %562 = vmatpush1.msra.mxu0 0.0
    %563 = vmatprep.subr.mxu0 0.0
    %564 = vmatpush1.msra.mxu0 0.0
    %565 = vmatprep.subr.mxu0 0.0
    %566 = vmatpush1.msra.mxu0 0.0
    %567 = vmatprep.subr.mxu0 0.0
    %568 = vmatpush1.msra.mxu0 0.0
    %569 = vmatprep.subr.mxu0 0.0
    %570 = vmatpush1.msra.mxu0 0.0
    %571 = vmatprep.subr.mxu0 0.0
    %572 = vmatpush1.msra.mxu0 0.0
    %573 = vmatprep.subr.mxu0 0.0
    %574 = vmatpush1.msra.mxu0 0.0
    %575 = vmatprep.subr.mxu0 0.0
    %576 = vmatpush1.msra.mxu0 0.0
    %577 = vmatprep.subr.mxu0 0.0
    %578 = vmatpush1.msra.mxu0 0.0
    %579 = vmatprep.subr.mxu0 0.0
    %580 = vmatpush1.msra.mxu0 0.0
    %581 = vmatprep.subr.mxu0 0.0
    %582 = vmatpush1.msra.mxu0 0.0
    %583 = vmatprep.subr.mxu0 0.0
    %584 = vmatpush1.msra.mxu0 0.0
    %585 = vmatprep.subr.mxu0 0.0
    %586 = vmatpush1.msra.mxu0 0.0
    %587 = vmatprep.subr.mxu0 0.0
    %588 = vmatpush1.msra.mxu0 0.0
    %589 = vmatprep.subr.mxu0 0.0
    %590 = vmatpush1.msra.mxu0 0.0
    %591 = vmatprep.subr.mxu0 0.0
    %592 = vmatpush1.msra.mxu0 0.0
    %593 = vmatprep.subr.mxu0 0.0
    %594 = vmatpush1.msra.mxu0 0.0
    %595 = vmatprep.subr.mxu0 0.0
    %596 = vmatpush1.msra.mxu0 0.0
    %597 = vmatprep.subr.mxu0 0.0
    %598 = vmatpush1.msra.mxu0 0.0
    %599 = vmatprep.subr.mxu0 0.0
    %600 = vmatpush1.msra.mxu0 0.0
    %601 = vmatprep.mubr.f32.mxu0 0.0
    %602 = vmatmul.mubr.f32.gmra.mrb[0].mxu0 %v535
    %v603 = vpop.f32.mrb[0].mxu0
    %v604 = vadd.f32 0.0, %v603
    %v605 = vpop.f32.mrb[0].mxu0
    %606 = vdwg.mxu0
    %vm607 = vcmp.le.f32.partialorder %v209, %v288
    %v608 = vsel %vm607, 1, 0
    %v609 = vcvt.s32.f32 %v608
    %v610 = vadd.f32 %v609, 0.0
    %v611 = vsub.f32 1.0, %v609
    %v612 = vadd.f32 %v611, 0.0
    %vm613 = vcmp.le.f32.partialorder %v209, %v367
    %v614 = vsel %vm613, 1, 0
    %v615 = vcvt.s32.f32 %v614
    %v616 = vadd.f32 %v615, 0.0
    %v617 = vsub.f32 1.0, %v615
    %v618 = vadd.f32 %v612, %v617
    %vm619 = vcmp.le.f32.partialorder %v288, %v367
    %v620 = vsel %vm619, 1, 0
    %v621 = vcvt.s32.f32 %v620
    %v622 = vadd.f32 %v616, %v621
    %v623 = vsub.f32 1.0, %v621
    %v624 = vadd.f32 %v610, %v623
    %vm625 = vcmp.le.f32.partialorder %v209, %v446
    %v626 = vsel %vm625, 1, 0
    %v627 = vcvt.s32.f32 %v626
    %v628 = vadd.f32 %v627, 0.0
    %v629 = vsub.f32 1.0, %v627
    %v630 = vadd.f32 %v618, %v629
    %vm631 = vcmp.le.f32.partialorder %v288, %v446
    %v632 = vsel %vm631, 1, 0
    %v633 = vcvt.s32.f32 %v632
    %v634 = vadd.f32 %v628, %v633
    %v635 = vsub.f32 1.0, %v633
    %v636 = vadd.f32 %v624, %v635
    %vm637 = vcmp.le.f32.partialorder %v367, %v446
    %v638 = vsel %vm637, 1, 0
    %v639 = vcvt.s32.f32 %v638
    %v640 = vadd.f32 %v634, %v639
    %v641 = vsub.f32 1.0, %v639
    %v642 = vadd.f32 %v622, %v641
    %vm643 = vcmp.le.f32.partialorder %v209, %v525
    %v644 = vsel %vm643, 1, 0
    %v645 = vcvt.s32.f32 %v644
    %v646 = vadd.f32 %v645, 0.0
    %v647 = vsub.f32 1.0, %v645
    %v648 = vadd.f32 %v630, %v647
    %vm649 = vcmp.le.f32.partialorder %v288, %v525
    %v650 = vsel %vm649, 1, 0
    %v651 = vcvt.s32.f32 %v650
    %v652 = vadd.f32 %v646, %v651
    %v653 = vsub.f32 1.0, %v651
    %v654 = vadd.f32 %v636, %v653
    %vm655 = vcmp.le.f32.partialorder %v367, %v525
    %v656 = vsel %vm655, 1, 0
    %v657 = vcvt.s32.f32 %v656
    %v658 = vadd.f32 %v652, %v657
    %v659 = vsub.f32 1.0, %v657
    %v660 = vadd.f32 %v642, %v659
    %vm661 = vcmp.le.f32.partialorder %v446, %v525
    %v662 = vsel %vm661, 1, 0
    %v663 = vcvt.s32.f32 %v662
    %v664 = vadd.f32 %v658, %v663
    %v665 = vsub.f32 1.0, %v663
    %v666 = vadd.f32 %v640, %v665
    %vm667 = vcmp.le.f32.partialorder %v209, %v604
    %v668 = vsel %vm667, 1, 0
    %v669 = vcvt.s32.f32 %v668
    %v670 = vadd.f32 %v669, 0.0
    %v671 = vsub.f32 1.0, %v669
    %v672 = vadd.f32 %v648, %v671
    %vm673 = vcmp.le.f32.partialorder %v288, %v604
    %v674 = vsel %vm673, 1, 0
    %v675 = vcvt.s32.f32 %v674
    %v676 = vadd.f32 %v670, %v675
    %v677 = vsub.f32 1.0, %v675
    %v678 = vadd.f32 %v654, %v677
    %vm679 = vcmp.le.f32.partialorder %v367, %v604
    %v680 = vsel %vm679, 1, 0
    %v681 = vcvt.s32.f32 %v680
    %v682 = vadd.f32 %v676, %v681
    %v683 = vsub.f32 1.0, %v681
    %v684 = vadd.f32 %v660, %v683
    %vm685 = vcmp.le.f32.partialorder %v446, %v604
    %v686 = vsel %vm685, 1, 0
    %v687 = vcvt.s32.f32 %v686
    %v688 = vadd.f32 %v682, %v687
    %v689 = vsub.f32 1.0, %v687
    %v690 = vadd.f32 %v666, %v689
    %vm691 = vcmp.le.f32.partialorder %v525, %v604
    %v692 = vsel %vm691, 1, 0
    %v693 = vcvt.s32.f32 %v692
    %v694 = vadd.f32 %v688, %v693
    %v695 = vsub.f32 1.0, %v693
    %v696 = vadd.f32 %v664, %v695
    %vm697 = vcmp.ge.f32.partialorder %v672, 2.0
    %vm698 = vcmp.lt.f32.partialorder %v672, 4.0
    %vm699 = vmand %vm697, %vm698
    %v700 = vsel %vm699, %v209, 0.0
    %v701 = vadd.f32 %v700, 0.0
    %vm702 = vcmp.ge.f32.partialorder %v678, 2.0
    %vm703 = vcmp.lt.f32.partialorder %v678, 4.0
    %vm704 = vmand %vm702, %vm703
    %v705 = vsel %vm704, %v288, 0.0
    %v706 = vadd.f32 %v701, %v705
    %vm707 = vcmp.ge.f32.partialorder %v684, 2.0
    %vm708 = vcmp.lt.f32.partialorder %v684, 4.0
    %vm709 = vmand %vm707, %vm708
    %v710 = vsel %vm709, %v367, 0.0
    %v711 = vadd.f32 %v706, %v710
    %vm712 = vcmp.ge.f32.partialorder %v690, 2.0
    %vm713 = vcmp.lt.f32.partialorder %v690, 4.0
    %vm714 = vmand %vm712, %vm713
    %v715 = vsel %vm714, %v446, 0.0
    %v716 = vadd.f32 %v711, %v715
    %vm717 = vcmp.ge.f32.partialorder %v696, 2.0
    %vm718 = vcmp.lt.f32.partialorder %v696, 4.0
    %vm719 = vmand %vm717, %vm718
    %v720 = vsel %vm719, %v525, 0.0
    %v721 = vadd.f32 %v716, %v720
    %vm722 = vcmp.ge.f32.partialorder %v694, 2.0
    %vm723 = vcmp.lt.f32.partialorder %v694, 4.0
    %vm724 = vmand %vm722, %vm723
    %v725 = vsel %vm724, %v604, 0.0
    %v726 = vadd.f32 %v721, %v725
    %v727 = vmul.f32 %v726, 0.5
    %vm728 = vcmask 261120
    %729 = vst.msk [vmem:[#allocation8] sm:$0xff] %vm728, %v727
    // Predicated region
    $region26: #{tpu_custom_call.1} parent=1 // pred_check
      _
    $region27: #{tpu_custom_call.1} parent=1 // pred_check_branch
      %731 = sbr.rel (0) target = $region29
    $region28: #{tpu_custom_call.1} parent=1 // pred_region
      %s733 = ssub.s32 128, 128
      %734 = vsyncadd [#allocation4], %s733
      %s736 = sshll.u32 [#allocation8], 4
      %s737 = int_to_ptr.vmem [resolvable:$true] %s736
      %739 = dma.vmem_to_hbm [thread:$0]  %s737, 128, %s3, [#allocation4]
    $region29: #{tpu_custom_call.1} parent=1 // pred_fallthru
      _
    // Predicated region
    $region30: #{tpu_custom_call.1} parent=1 // pred_check
      _
    $region31: #{tpu_custom_call.1} parent=1 // pred_check_branch
      %741 = sbr.rel (0) target = $region33
    $region32: #{tpu_custom_call.1} parent=1 // pred_region
      %742 = dma.done [#allocation4], 128
    $region33: #{tpu_custom_call.1} parent=1 // pred_fallthru
      _
    %743 = vsyncpa [#allocation3], 1
    %744 = vsyncpa [#allocation6], 1
    %745 = vsyncpa [#allocation4], 1

</llo_original>
